<compile_context>
chip_gen: v6e
topology: v6e:2x2x1
jax: 0.10.0
libtpu: 0.0.40
codegen_flags: <defaults>
</compile_context>

<pallas_src>
import jax
import jax.numpy as jnp
from jax.experimental import pallas as pl
from jax.experimental.pallas import tpu as pltpu


# Max rows per N-tile: keeps 2*(x_tile + out_tile) + weight well under v7x's
# 64 MiB physical VMEM (bf16 x-tile 1 MiB + f32 out-tile 4 MiB at 2048 rows).
MAX_TILE_N = 2048


def _round_up(a, b):
    return ((a + b - 1) // b) * b


def _fused_mixing_kernel(x_ref, w_ref, o_ref):
    # x_ref: (TN, G*Pin*Cin)  bf16 N-tile of flattened inputs
    # w_ref: (G*Pin*Cin, G*Pout*Cout)  bf16 block-diagonal fused weight (VMEM-resident)
    # o_ref: (TN, G*Pout*Cout)  f32 output tile
    o_ref[...] = jnp.dot(
        x_ref[...], w_ref[...], preferred_element_type=jnp.float32
    ).astype(o_ref.dtype)


def build_fused_weight(m_weight, s_weight, dtype=jnp.bfloat16):
    """Build the block-diagonal fused mixing weight once per weight update.

    m_weight: (G, Cin, Cout) channel mixing; s_weight: (G, Pout, Pin) point mixing.
    Returns (G*Pin*Cin, G*Pout*Cout) in `dtype`.
    """
    G, Cin, Cout = m_weight.shape
    _, Pout, Pin = s_weight.shape
    # Per-group Kronecker weight: w_g[g, (p,c), (o,d)] = S[g,o,p] * M[g,c,d]
    w_g = jnp.einsum("gop,gcd->gpcod", s_weight, m_weight)
    w_g = w_g.reshape(G, Pin * Cin, Pout * Cout)
    # Block-diagonal across groups.
    w_bd = jnp.einsum("gh,gkl->gkhl", jnp.eye(G, dtype=w_g.dtype), w_g)
    return w_bd.reshape(G * Pin * Cin, G * Pout * Cout).astype(dtype)


def sr_mixing_forward(x, query, m_weight, s_weight, *, fused_weight=None,
                      tile_n=MAX_TILE_N):
    """x: (B, Q, G, Pin, Cin); query: (B, Q, query_dim) (unused by the shadowed op).
    m_weight: (G, Cin, Cout); s_weight: (G, Pout, Pin).
    fused_weight: optional precomputed result of build_fused_weight() (hoist it
    out of the per-step forward when weights are static between calls).
    Returns (B, Q, G, Pout, Cout) in x.dtype."""
    del query  # unused by the shadowed compute

    B, Q, G, Pin, Cin = x.shape
    Cout = m_weight.shape[-1]
    Pout = s_weight.shape[-2]
    N = B * Q
    Kin = G * Pin * Cin
    Kout = G * Pout * Cout

    w_bd = fused_weight if fused_weight is not None else build_fused_weight(
        m_weight, s_weight, jnp.bfloat16)
    w_bd = w_bd.astype(jnp.bfloat16)

    # Pure reshape (contiguous) + bf16 cast of the streaming operand.
    x2 = x.reshape(N, Kin).astype(jnp.bfloat16)

    # --- N-tile selection -----------------------------------------------
    # * cap so double-buffered footprint fits v7x's 64 MiB VMEM,
    # * >= 2 grid steps when N allows (v7x megacore via "parallel" axis),
    # * balanced tiles so a ragged last step is not mostly padding.
    cap = max(8, _round_up(min(int(tile_n), MAX_TILE_N), 8))
    min_steps = 2 if N >= 16 else 1
    steps = max(min_steps, pl.cdiv(N, cap))
    tn = min(_round_up(pl.cdiv(N, steps), 8), _round_up(N, 8))
    grid_n = pl.cdiv(N, tn)

    cost = pl.CostEstimate(
        flops=2 * N * Kin * Kout,
        transcendentals=0,
        bytes_accessed=N * Kin * 2 + Kin * Kout * 2 + N * Kout * 4,
    )

    out2 = pl.pallas_call(
        _fused_mixing_kernel,
        out_shape=jax.ShapeDtypeStruct((N, Kout), x.dtype),
        grid=(grid_n,),
        in_specs=[
            pl.BlockSpec((tn, Kin), lambda i: (i, 0)),
            # Constant index_map + single buffer: weight DMA'd once, resident
            # in VMEM across all grid steps, no wasted second buffer.
            pl.BlockSpec((Kin, Kout), lambda i: (0, 0),
                         pipeline_mode=pl.Buffered(1)),
        ],
        out_specs=pl.BlockSpec((tn, Kout), lambda i: (i, 0)),
        compiler_params=pltpu.CompilerParams(
            dimension_semantics=("parallel",),
            vmem_limit_bytes=48 * 1024 * 1024,
        ),
        cost_estimate=cost,
    )(x2, w_bd)

    return out2.reshape(B, Q, G, Pout, Cout)


if __name__ == "__main__":
    # Small config consistent with the module's __init__ semantics:
    # in_dim=32, p_groups=4 -> eff_in_dim = 8; in_points=8;
    # out_dim=32 -> eff_out_dim = 8; out_points=16; query_dim=32.
    B, Q, G = 2, 8, 4
    in_dim, out_dim = 32, 32
    in_points, out_points = 8, 16
    eff_in_dim = in_dim // G
    eff_out_dim = out_dim // G
    query_dim = 32

    key = jax.random.PRNGKey(0)
    kx, kq, km, ks = jax.random.split(key, 4)

    x = jax.random.normal(kx, (B, Q, G, in_points, eff_in_dim), jnp.float32)
    query = jax.random.normal(kq, (B, Q, query_dim), jnp.float32)

    # Deterministic synthetic mixing parameters (not a checkpoint load).
    m_weight = jax.random.normal(km, (G, eff_in_dim, eff_out_dim), jnp.float32) * 0.1
    s_weight = jax.random.normal(ks, (G, out_points, in_points), jnp.float32) * 0.1

    # Hoisted fused-weight construction (built once per weight update).
    w_fused = build_fused_weight(m_weight, s_weight, jnp.bfloat16)

    out = sr_mixing_forward(x, query, m_weight, s_weight, fused_weight=w_fused)
    out = jax.block_until_ready(out)

    # Pure-JAX f32 reference of the shadowed compute (unfused two-step form).
    tmp_ref = jnp.einsum("bqgpc,gcd->bqgpd", x, m_weight)
    ref = jnp.einsum("gop,bqgpd->bqgod", s_weight, tmp_ref)

    assert out.shape == (B, Q, G, out_points, eff_out_dim)
    # bf16 inputs / f32 accumulation -> relaxed tolerance vs. the f32 reference.
    assert jnp.allclose(out, ref, atol=1e-2, rtol=1e-2)

    print("KERNEL_OK")
</pallas_src>

<mosaic_0001>
module attributes {stable_mosaic.version = 11 : i64} {
  func.func @_fused_mixing_kernel(%arg0: i32, %arg1: memref<8x256xbf16, #tpu.memory_space<vmem>>, %arg2: memref<256x512xbf16, #tpu.memory_space<vmem>>, %arg3: memref<8x512xf32, #tpu.memory_space<vmem>>) attributes {dimension_semantics = [#tpu.dimension_semantics<parallel>], iteration_bounds = array<i64: 2>, scalar_prefetch = 0 : i64, scratch_operands = 0 : i64, tpu.core_type = #tpu.core_type<tc>, window_params = [{transform_indices = @transform_0, window_bounds = array<i64: 8, 256>}, {pipeline_mode = #tpu.pipeline_mode<synchronous>, transform_indices = @transform_1, window_bounds = array<i64: 256, 512>}, {transform_indices = @transform_2, window_bounds = array<i64: 8, 512>}]} {
    %c0 = arith.constant 0 : index
    %c0_0 = arith.constant 0 : index
    %0 = vector.load %arg1[%c0, %c0_0] : memref<8x256xbf16, #tpu.memory_space<vmem>>, vector<8x256xbf16>
    %c0_1 = arith.constant 0 : index
    %c0_2 = arith.constant 0 : index
    %1 = vector.load %arg2[%c0_1, %c0_2] : memref<256x512xbf16, #tpu.memory_space<vmem>>, vector<256x512xbf16>
    %cst = arith.constant dense<0.000000e+00> : vector<8x512xf32>
    %2 = tpu.matmul %0, %1, %cst {dimension_numbers = #tpu.dot_dimension_numbers<[1], [0], [0], [1], [0, 0, 1, 1], [], []>} : vector<8x256xbf16>, vector<256x512xbf16>, vector<8x512xf32> -> vector<8x512xf32>
    %c0_3 = arith.constant 0 : index
    %c0_4 = arith.constant 0 : index
    %3 = vector.load %arg3[%c0_3, %c0_4] : memref<8x512xf32, #tpu.memory_space<vmem>>, vector<8x512xf32>
    tpu.vector_store %arg3[%c0_3, %c0_4], %2 {strides = array<i32>} : memref<8x512xf32, #tpu.memory_space<vmem>>, vector<8x512xf32>,
    return
  }
  func.func @transform_0(%arg0: i32) -> (i32, i32) {
    %c0_i32 = arith.constant 0 : i32
    %c0_i32_0 = arith.constant 0 : i32
    return %arg0, %c0_i32 : i32, i32
  }
  func.func @transform_1(%arg0: i32) -> (i32, i32) {
    %c0_i32 = arith.constant 0 : i32
    %c0_i32_0 = arith.constant 0 : i32
    %c0_i32_1 = arith.constant 0 : i32
    return %c0_i32, %c0_i32_0 : i32, i32
  }
  func.func @transform_2(%arg0: i32) -> (i32, i32) {
    %c0_i32 = arith.constant 0 : i32
    %c0_i32_0 = arith.constant 0 : i32
    return %arg0, %c0_i32 : i32, i32
  }
}

</mosaic_0001>

<llo_original>
// kernel: tpu_custom_call.1
$region0: #{tpu_custom_call.1}
  #allocation0 [shape = 'u32[]', space=smem, size = 0x4, offset = 0x4, fixed_abs, tag = 'smem constant byte address 0x4 - core index']
  #allocation1 [shape = 'u32[144,128]{1,0:T(1,128)}', space=vmem, size = 0x12000, scoped, tag = 'internal scratch']
  %s0 = inlined_call_operand.hbm [shape: bf16[16,256], index: 0, kind: input, shape index: {}]
  %s1 = inlined_call_operand.hbm [shape: bf16[256,512], index: 1, kind: input, shape index: {}]
  %s2 = inlined_call_operand.hbm [shape: f32[16,512], index: 2, kind: output, shape index: {}]
  %s3 = sld [smem:[#allocation0]]
  $region49: #{tpu_custom_call.1} parent=0
    _
  %s5 = ssub.s32 1, %s3
  %s6 = scalar_select 0, %s5, %s3
  $region1: #{tpu_custom_call.1} parent=0
    #allocation2 [shape = 'u8[8192]{0}', space=vmem, size = 0x2000, scoped, tag = 'input window, operand 0']
    #allocation3 [shape = 's32[2]{0}', space=sflag, size = 0x8, scoped, tag = 'scoped memory for tpu_custom_call.1']
    #allocation4 [shape = 's32[2]{0}', space=sflag, size = 0x8, scoped, tag = 'scoped memory for tpu_custom_call.1']
    #allocation5 [shape = 'u8[262144]{0}', space=vmem, size = 0x40000, scoped, tag = 'input window, operand 1, single buffered']
    #allocation6 [shape = 's32[1]{0}', space=sflag, size = 0x4, scoped, tag = 'scoped memory for tpu_custom_call.1']
    #allocation7 [shape = 'u8[32768]{0}', space=vmem, size = 0x8000, scoped, tag = 'output window, operand 0']
    %7 = vsyncpa [#allocation3], 0
    %s8 = scalar_lea.sflag [#allocation3], 1
    %9 = vsyncpa %s8, 0
    %10 = vsyncpa [#allocation6], 0
    %11 = vsyncpa [#allocation4], 0
    %s12 = scalar_lea.sflag [#allocation4], 1
    %13 = vsyncpa %s12, 0
    loop: start=0, step=1, limit=4
    $region2: #{tpu_custom_call.1} parent=1 // loop_pre_header
      _
    $region3: #{tpu_custom_call.1} parent=1 // loop_header
      %s15 = sphi 0, %s19
      %p16 = scmp.ge.s32.totalorder %s15, 4
      %s25 = sphi 0, %s27
      %s28 = sphi 0, %s25
      %s29 = sphi 0, %s28
      %s45 = sphi 0, %s29
      %s49 = sphi 0, %s49
      %s51 = sphi 0, %s49
      %s52 = sphi 0, %s51
      %s66 = sphi 0, %s52
      %s72 = sphi 0, %s74
      %s75 = sphi 0, %s72
      %s76 = sphi 0, %s75
      %s92 = sphi 0, %s76
    $region4: #{tpu_custom_call.1} parent=1 // loop_header_branch
      %18 = sbr.rel (%p16) target = $region8
    $region5: #{tpu_custom_call.1} parent=1 // loop_body
      %s20 = ssub.s32 %s15, 1
      %s21 = ssub.s32 %s15, 2
      %s22 = sadd.s32 %s15, 1
      %s23 = ssub.s32 %s15, %s22
      %p24 = scmp.eq.s32.totalorder %s23, 0
      %s26 = sadd.s32 %s25, 1
      %s27 = scalar_select %p24, %s25, %s26
      %p30 = pneg %p24
      %p31 = scmp.eq.s32.totalorder %s15, 1
      %p32 = por %p30, %p31
      %p33 = scmp.ne.s32.totalorder %s25, %s28
      %p34 = scmp.eq.s32.totalorder %s15, 0
      %p35 = por %p33, %p34
      %p36 = scmp.ne.s32.totalorder %s25, %s28
      %p37 = scmp.eq.s32.totalorder %s20, 1
      %p38 = por %p36, %p37
      %p39 = scmp.ne.s32.totalorder %s28, %s29
      %p40 = scmp.eq.s32.totalorder %s20, 0
      %p41 = por %p39, %p40
      %p42 = scmp.ne.s32.totalorder %s28, %s29
      %p43 = scmp.eq.s32.totalorder %s21, 1
      %p44 = por %p42, %p43
      %p46 = scmp.ne.s32.totalorder %s29, %s45
      %p47 = scmp.eq.s32.totalorder %s21, 0
      %p48 = por %p46, %p47
      %s50 = sadd.s32 %s49, 1
      %p53 = scmp.eq.s32.totalorder %s15, 1
      %p54 = scmp.ne.s32.totalorder %s49, %s51
      %p55 = scmp.eq.s32.totalorder %s15, 0
      %p56 = por %p54, %p55
      %p57 = scmp.ne.s32.totalorder %s49, %s51
      %p58 = scmp.eq.s32.totalorder %s20, 1
      %p59 = por %p57, %p58
      %p60 = scmp.ne.s32.totalorder %s51, %s52
      %p61 = scmp.eq.s32.totalorder %s20, 0
      %p62 = por %p60, %p61
      %p63 = scmp.ne.s32.totalorder %s51, %s52
      %p64 = scmp.eq.s32.totalorder %s21, 1
      %p65 = por %p63, %p64
      %p67 = scmp.ne.s32.totalorder %s52, %s66
      %p68 = scmp.eq.s32.totalorder %s21, 0
      %p69 = por %p67, %p68
      %s70 = ssub.s32 %s15, %s22
      %p71 = scmp.eq.s32.totalorder %s70, 0
      %s73 = sadd.s32 %s72, 1
      %s74 = scalar_select %p71, %s72, %s73
      %p77 = pneg %p71
      %p78 = scmp.eq.s32.totalorder %s15, 1
      %p79 = por %p77, %p78
      %p80 = scmp.ne.s32.totalorder %s72, %s75
      %p81 = scmp.eq.s32.totalorder %s15, 0
      %p82 = por %p80, %p81
      %p83 = scmp.ne.s32.totalorder %s72, %s75
      %p84 = scmp.eq.s32.totalorder %s20, 1
      %p85 = por %p83, %p84
      %p86 = scmp.ne.s32.totalorder %s75, %s76
      %p87 = scmp.eq.s32.totalorder %s20, 0
      %p88 = por %p86, %p87
      %p89 = scmp.ne.s32.totalorder %s75, %s76
      %p90 = scmp.eq.s32.totalorder %s21, 1
      %p91 = por %p89, %p90
      %p93 = scmp.ne.s32.totalorder %s76, %s92
      %p94 = scmp.eq.s32.totalorder %s21, 0
      %p95 = por %p93, %p94
      %p96 = scmp.le.s32.totalorder 1, %s15
      %p97 = scmp.lt.s32.totalorder %s15, 3
      %p98 = pnand %p96, %p97
      %p99 = pneg %p98
      // Predicated region
      $region9: #{tpu_custom_call.1} parent=5 // pred_check
        _
      $region10: #{tpu_custom_call.1} parent=5 // pred_check_branch
        %101 = sbr.rel (%p98) target = $region12
      $region11: #{tpu_custom_call.1} parent=5 // pred_region
        %s102 = ssub.s32 %s15, 1
        // Predicated region
        $region13: #{tpu_custom_call.1} parent=11 // pred_check
          %p103 = pneg %p62
        $region14: #{tpu_custom_call.1} parent=11 // pred_check_branch
          %105 = sbr.rel (%p103) target = $region16
        $region15: #{tpu_custom_call.1} parent=11 // pred_region
          %s107 = ssub.s32 8192, 8192
          %108 = vsyncadd [#allocation6], %s107
          %s109 = sshll.u32 [#allocation5], 4
          %s110 = int_to_ptr.vmem [resolvable:$true] %s109
          %115 = dma.hbm_to_vmem [thread:$0]  %s1, 8192, %s110, [#allocation6], 256, 256, 16
        $region16: #{tpu_custom_call.1} parent=11 // pred_fallthru
          _
      $region12: #{tpu_custom_call.1} parent=5 // pred_fallthru
        _
      %p116 = scmp.lt.s32.totalorder %s15, 2
      // Predicated region
      $region17: #{tpu_custom_call.1} parent=5 // pred_check
        %p117 = pneg %p116
      $region18: #{tpu_custom_call.1} parent=5 // pred_check_branch
        %119 = sbr.rel (%p117) target = $region20
      $region19: #{tpu_custom_call.1} parent=5 // pred_region
        // Predicated region
        $region21: #{tpu_custom_call.1} parent=19 // pred_check
          %p120 = pneg %p35
        $region22: #{tpu_custom_call.1} parent=19 // pred_check_branch
          %122 = sbr.rel (%p120) target = $region24
        $region23: #{tpu_custom_call.1} parent=19 // pred_region
          %s123 = sand.u32 %s25, 1
          %s124 = scalar_lea.sflag [#allocation3], %s123
          %s125 = sand.u32 %s25, 1
          %s126 = smul.addr %s125, 8
          %s127 = scalar_lea.vmem [#allocation2], %s126
          %s129 = ssub.s32 128, 128
          %130 = vsyncadd %s124, %s129
          %s131 = smul.addr %s15, 2
          %s132 = smul.addr %s131, 64
          %s133 = scalar_lea.hbm %s0, %s132
          %s135 = sshll.u32 %s127, 4
          %s136 = int_to_ptr.vmem [resolvable:$true] %s135
          %138 = dma.hbm_to_vmem [thread:$0]  %s133, 128, %s136, %s124
        $region24: #{tpu_custom_call.1} parent=19 // pred_fallthru
          _
      $region20: #{tpu_custom_call.1} parent=5 // pred_fallthru
        _
      %p139 = scmp.le.s32.totalorder 1, %s15
      %p140 = scmp.lt.s32.totalorder %s15, 3
      %p141 = pnand %p139, %p140
      %p142 = pneg %p141
      // Predicated region
      $region25: #{tpu_custom_call.1} parent=5 // pred_check
        _
      $region26: #{tpu_custom_call.1} parent=5 // pred_check_branch
        %144 = sbr.rel (%p141) target = $region28
      $region27: #{tpu_custom_call.1} parent=5 // pred_region
        %s145 = ssub.s32 %s15, 1
        %s146 = sand.u32 %s28, 1
        %s147 = scalar_lea.sflag [#allocation3], %s146
        %s148 = sand.u32 %s28, 1
        %s149 = smul.addr %s148, 8
        %s150 = scalar_lea.vmem [#allocation2], %s149
        // Predicated region
        $region29: #{tpu_custom_call.1} parent=27 // pred_check
          %p151 = pneg %p41
        $region30: #{tpu_custom_call.1} parent=27 // pred_check_branch
          %153 = sbr.rel (%p151) target = $region32
        $region31: #{tpu_custom_call.1} parent=27 // pred_region
          %154 = dma.done %s147, 128
        $region32: #{tpu_custom_call.1} parent=27 // pred_fallthru
          _
        // Predicated region
        $region33: #{tpu_custom_call.1} parent=27 // pred_check
          %p155 = pneg %p62
        $region34: #{tpu_custom_call.1} parent=27 // pred_check_branch
          %157 = sbr.rel (%p155) target = $region36
        $region35: #{tpu_custom_call.1} parent=27 // pred_region
          %158 = dma.done [#allocation6], 8192
        $region36: #{tpu_custom_call.1} parent=27 // pred_fallthru
          _
        %s159 = sand.u32 %s28, 1
        %s160 = scalar_lea.sflag [#allocation3], %s159
        %s161 = sand.u32 %s28, 1
        %s162 = smul.addr %s161, 8
        %s163 = scalar_lea.vmem [#allocation2], %s162
        %p164 = pneg %p41
        %p165 = pneg %p38
        %p166 = pneg %p62
        %p167 = pneg %p59
        %p168 = pneg %p88
        %p169 = pneg %p85
        %s170 = sand.u32 %s75, 1
        %s171 = scalar_lea.sflag [#allocation4], %s170
        %s172 = sand.u32 %s75, 1
        %s173 = smul.addr %s172, 32
        %s174 = scalar_lea.vmem [#allocation7], %s173
        %v175 = vld [vmem:[%s150] sm:$0xff]
        %v176 = vld [vmem:[#allocation5] sm:$0xff]
        %v177 = vld [vmem:[#allocation5 + $0x8] sm:$0xff]
        %v178 = vld [vmem:[#allocation5 + $0x10] sm:$0xff]
        %v179 = vld [vmem:[#allocation5 + $0x18] sm:$0xff]
        %v180 = vld [vmem:[#allocation5 + $0x20] sm:$0xff]
        %v181 = vld [vmem:[#allocation5 + $0x28] sm:$0xff]
        %v182 = vld [vmem:[#allocation5 + $0x30] sm:$0xff]
        %v183 = vld [vmem:[#allocation5 + $0x38] sm:$0xff]
        %v184 = vld [vmem:[#allocation5 + $0x40] sm:$0xff]
        %v185 = vld [vmem:[#allocation5 + $0x48] sm:$0xff]
        %v186 = vld [vmem:[#allocation5 + $0x50] sm:$0xff]
        %v187 = vld [vmem:[#allocation5 + $0x58] sm:$0xff]
        %v188 = vld [vmem:[#allocation5 + $0x60] sm:$0xff]
        %v189 = vld [vmem:[#allocation5 + $0x68] sm:$0xff]
        %v190 = vld [vmem:[#allocation5 + $0x70] sm:$0xff]
        %v191 = vld [vmem:[#allocation5 + $0x78] sm:$0xff]
        %v192 = vld [vmem:[#allocation5 + $0x80] sm:$0xff]
        %v193 = vld [vmem:[#allocation5 + $0x88] sm:$0xff]
        %v194 = vld [vmem:[#allocation5 + $0x90] sm:$0xff]
        %v195 = vld [vmem:[#allocation5 + $0x98] sm:$0xff]
        %v196 = vld [vmem:[#allocation5 + $0xa0] sm:$0xff]
        %v197 = vld [vmem:[#allocation5 + $0xa8] sm:$0xff]
        %v198 = vld [vmem:[#allocation5 + $0xb0] sm:$0xff]
        %v199 = vld [vmem:[#allocation5 + $0xb8] sm:$0xff]
        %v200 = vld [vmem:[#allocation5 + $0xc0] sm:$0xff]
        %v201 = vld [vmem:[#allocation5 + $0xc8] sm:$0xff]
        %v202 = vld [vmem:[#allocation5 + $0xd0] sm:$0xff]
        %v203 = vld [vmem:[#allocation5 + $0xd8] sm:$0xff]
        %v204 = vld [vmem:[#allocation5 + $0xe0] sm:$0xff]
        %v205 = vld [vmem:[#allocation5 + $0xe8] sm:$0xff]
        %v206 = vld [vmem:[#allocation5 + $0xf0] sm:$0xff]
        %v207 = vld [vmem:[#allocation5 + $0xf8] sm:$0xff]
        %v208 = vld [vmem:[#allocation5 + $0x100] sm:$0xff]
        %v209 = vld [vmem:[#allocation5 + $0x108] sm:$0xff]
        %v210 = vld [vmem:[#allocation5 + $0x110] sm:$0xff]
        %v211 = vld [vmem:[#allocation5 + $0x118] sm:$0xff]
        %v212 = vld [vmem:[#allocation5 + $0x120] sm:$0xff]
        %v213 = vld [vmem:[#allocation5 + $0x128] sm:$0xff]
        %v214 = vld [vmem:[#allocation5 + $0x130] sm:$0xff]
        %v215 = vld [vmem:[#allocation5 + $0x138] sm:$0xff]
        %v216 = vld [vmem:[#allocation5 + $0x140] sm:$0xff]
        %v217 = vld [vmem:[#allocation5 + $0x148] sm:$0xff]
        %v218 = vld [vmem:[#allocation5 + $0x150] sm:$0xff]
        %v219 = vld [vmem:[#allocation5 + $0x158] sm:$0xff]
        %v220 = vld [vmem:[#allocation5 + $0x160] sm:$0xff]
        %v221 = vld [vmem:[#allocation5 + $0x168] sm:$0xff]
        %v222 = vld [vmem:[#allocation5 + $0x170] sm:$0xff]
        %v223 = vld [vmem:[#allocation5 + $0x178] sm:$0xff]
        %v224 = vld [vmem:[#allocation5 + $0x180] sm:$0xff]
        %v225 = vld [vmem:[#allocation5 + $0x188] sm:$0xff]
        %v226 = vld [vmem:[#allocation5 + $0x190] sm:$0xff]
        %v227 = vld [vmem:[#allocation5 + $0x198] sm:$0xff]
        %v228 = vld [vmem:[#allocation5 + $0x1a0] sm:$0xff]
        %v229 = vld [vmem:[#allocation5 + $0x1a8] sm:$0xff]
        %v230 = vld [vmem:[#allocation5 + $0x1b0] sm:$0xff]
        %v231 = vld [vmem:[#allocation5 + $0x1b8] sm:$0xff]
        %v232 = vld [vmem:[#allocation5 + $0x1c0] sm:$0xff]
        %v233 = vld [vmem:[#allocation5 + $0x1c8] sm:$0xff]
        %v234 = vld [vmem:[#allocation5 + $0x1d0] sm:$0xff]
        %v235 = vld [vmem:[#allocation5 + $0x1d8] sm:$0xff]
        %v236 = vld [vmem:[#allocation5 + $0x1e0] sm:$0xff]
        %v237 = vld [vmem:[#allocation5 + $0x1e8] sm:$0xff]
        %v238 = vld [vmem:[#allocation5 + $0x1f0] sm:$0xff]
        %v239 = vld [vmem:[#allocation5 + $0x1f8] sm:$0xff]
        %v241 = vunpack.c.l.b16 %v175
        %v242 = vunpack.c.h.b16 %v175
        %v243 = vpack.c.b16 %v241, %v241
        %v244 = vpack.c.b16 %v242, %v242
        %v311 = vunpack.c.l.b16 %v176
        %v312 = vunpack.c.h.b16 %v176
        %v313 = vunpack.c.l.b16 %v177
        %v314 = vunpack.c.h.b16 %v177
        %v315 = vunpack.c.l.b16 %v178
        %v316 = vunpack.c.h.b16 %v178
        %v317 = vunpack.c.l.b16 %v179
        %v318 = vunpack.c.h.b16 %v179
        %v319 = vunpack.c.l.b16 %v180
        %v320 = vunpack.c.h.b16 %v180
        %v321 = vunpack.c.l.b16 %v181
        %v322 = vunpack.c.h.b16 %v181
        %v323 = vunpack.c.l.b16 %v182
        %v324 = vunpack.c.h.b16 %v182
        %v325 = vunpack.c.l.b16 %v183
        %v326 = vunpack.c.h.b16 %v183
        %v327 = vunpack.c.l.b16 %v184
        %v328 = vunpack.c.h.b16 %v184
        %v329 = vunpack.c.l.b16 %v185
        %v330 = vunpack.c.h.b16 %v185
        %v331 = vunpack.c.l.b16 %v186
        %v332 = vunpack.c.h.b16 %v186
        %v333 = vunpack.c.l.b16 %v187
        %v334 = vunpack.c.h.b16 %v187
        %v335 = vunpack.c.l.b16 %v188
        %v336 = vunpack.c.h.b16 %v188
        %v337 = vunpack.c.l.b16 %v189
        %v338 = vunpack.c.h.b16 %v189
        %v339 = vunpack.c.l.b16 %v190
        %v340 = vunpack.c.h.b16 %v190
        %v341 = vunpack.c.l.b16 %v191
        %v342 = vunpack.c.h.b16 %v191
        %v343 = vunpack.c.l.b16 %v192
        %v344 = vunpack.c.h.b16 %v192
        %v345 = vunpack.c.l.b16 %v193
        %v346 = vunpack.c.h.b16 %v193
        %v347 = vunpack.c.l.b16 %v194
        %v348 = vunpack.c.h.b16 %v194
        %v349 = vunpack.c.l.b16 %v195
        %v350 = vunpack.c.h.b16 %v195
        %v351 = vunpack.c.l.b16 %v196
        %v352 = vunpack.c.h.b16 %v196
        %v353 = vunpack.c.l.b16 %v197
        %v354 = vunpack.c.h.b16 %v197
        %v355 = vunpack.c.l.b16 %v198
        %v356 = vunpack.c.h.b16 %v198
        %v357 = vunpack.c.l.b16 %v199
        %v358 = vunpack.c.h.b16 %v199
        %v359 = vunpack.c.l.b16 %v200
        %v360 = vunpack.c.h.b16 %v200
        %v361 = vunpack.c.l.b16 %v201
        %v362 = vunpack.c.h.b16 %v201
        %v363 = vunpack.c.l.b16 %v202
        %v364 = vunpack.c.h.b16 %v202
        %v365 = vunpack.c.l.b16 %v203
        %v366 = vunpack.c.h.b16 %v203
        %v367 = vunpack.c.l.b16 %v204
        %v368 = vunpack.c.h.b16 %v204
        %v369 = vunpack.c.l.b16 %v205
        %v370 = vunpack.c.h.b16 %v205
        %v371 = vunpack.c.l.b16 %v206
        %v372 = vunpack.c.h.b16 %v206
        %v373 = vunpack.c.l.b16 %v207
        %v374 = vunpack.c.h.b16 %v207
        %v375 = vunpack.c.l.b16 %v208
        %v376 = vunpack.c.h.b16 %v208
        %v377 = vunpack.c.l.b16 %v209
        %v378 = vunpack.c.h.b16 %v209
        %v379 = vunpack.c.l.b16 %v210
        %v380 = vunpack.c.h.b16 %v210
        %v381 = vunpack.c.l.b16 %v211
        %v382 = vunpack.c.h.b16 %v211
        %v383 = vunpack.c.l.b16 %v212
        %v384 = vunpack.c.h.b16 %v212
        %v385 = vunpack.c.l.b16 %v213
        %v386 = vunpack.c.h.b16 %v213
        %v387 = vunpack.c.l.b16 %v214
        %v388 = vunpack.c.h.b16 %v214
        %v389 = vunpack.c.l.b16 %v215
        %v390 = vunpack.c.h.b16 %v215
        %v391 = vunpack.c.l.b16 %v216
        %v392 = vunpack.c.h.b16 %v216
        %v393 = vunpack.c.l.b16 %v217
        %v394 = vunpack.c.h.b16 %v217
        %v395 = vunpack.c.l.b16 %v218
        %v396 = vunpack.c.h.b16 %v218
        %v397 = vunpack.c.l.b16 %v219
        %v398 = vunpack.c.h.b16 %v219
        %v399 = vunpack.c.l.b16 %v220
        %v400 = vunpack.c.h.b16 %v220
        %v401 = vunpack.c.l.b16 %v221
        %v402 = vunpack.c.h.b16 %v221
        %v403 = vunpack.c.l.b16 %v222
        %v404 = vunpack.c.h.b16 %v222
        %v405 = vunpack.c.l.b16 %v223
        %v406 = vunpack.c.h.b16 %v223
        %v407 = vunpack.c.l.b16 %v224
        %v408 = vunpack.c.h.b16 %v224
        %v409 = vunpack.c.l.b16 %v225
        %v410 = vunpack.c.h.b16 %v225
        %v411 = vunpack.c.l.b16 %v226
        %v412 = vunpack.c.h.b16 %v226
        %v413 = vunpack.c.l.b16 %v227
        %v414 = vunpack.c.h.b16 %v227
        %v415 = vunpack.c.l.b16 %v228
        %v416 = vunpack.c.h.b16 %v228
        %v417 = vunpack.c.l.b16 %v229
        %v418 = vunpack.c.h.b16 %v229
        %v419 = vunpack.c.l.b16 %v230
        %v420 = vunpack.c.h.b16 %v230
        %v421 = vunpack.c.l.b16 %v231
        %v422 = vunpack.c.h.b16 %v231
        %v423 = vunpack.c.l.b16 %v232
        %v424 = vunpack.c.h.b16 %v232
        %v425 = vunpack.c.l.b16 %v233
        %v426 = vunpack.c.h.b16 %v233
        %v427 = vunpack.c.l.b16 %v234
        %v428 = vunpack.c.h.b16 %v234
        %v429 = vunpack.c.l.b16 %v235
        %v430 = vunpack.c.h.b16 %v235
        %v431 = vunpack.c.l.b16 %v236
        %v432 = vunpack.c.h.b16 %v236
        %v433 = vunpack.c.l.b16 %v237
        %v434 = vunpack.c.h.b16 %v237
        %v435 = vunpack.c.l.b16 %v238
        %v436 = vunpack.c.h.b16 %v238
        %v437 = vunpack.c.l.b16 %v239
        %v438 = vunpack.c.h.b16 %v239
        %v439 = vpack.c.b16 %v315, %v311
        %v440 = vpack.c.b16 %v316, %v312
        %v441 = vpack.c.b16 %v317, %v313
        %v442 = vpack.c.b16 %v318, %v314
        %v443 = vpack.c.b16 %v323, %v319
        %v444 = vpack.c.b16 %v324, %v320
        %v445 = vpack.c.b16 %v325, %v321
        %v446 = vpack.c.b16 %v326, %v322
        %v447 = vpack.c.b16 %v331, %v327
        %v448 = vpack.c.b16 %v332, %v328
        %v449 = vpack.c.b16 %v333, %v329
        %v450 = vpack.c.b16 %v334, %v330
        %v451 = vpack.c.b16 %v339, %v335
        %v452 = vpack.c.b16 %v340, %v336
        %v453 = vpack.c.b16 %v341, %v337
        %v454 = vpack.c.b16 %v342, %v338
        %v455 = vpack.c.b16 %v347, %v343
        %v456 = vpack.c.b16 %v348, %v344
        %v457 = vpack.c.b16 %v349, %v345
        %v458 = vpack.c.b16 %v350, %v346
        %v459 = vpack.c.b16 %v355, %v351
        %v460 = vpack.c.b16 %v356, %v352
        %v461 = vpack.c.b16 %v357, %v353
        %v462 = vpack.c.b16 %v358, %v354
        %v463 = vpack.c.b16 %v363, %v359
        %v464 = vpack.c.b16 %v364, %v360
        %v465 = vpack.c.b16 %v365, %v361
        %v466 = vpack.c.b16 %v366, %v362
        %v467 = vpack.c.b16 %v371, %v367
        %v468 = vpack.c.b16 %v372, %v368
        %v469 = vpack.c.b16 %v373, %v369
        %v470 = vpack.c.b16 %v374, %v370
        %v471 = vpack.c.b16 %v379, %v375
        %v472 = vpack.c.b16 %v380, %v376
        %v473 = vpack.c.b16 %v381, %v377
        %v474 = vpack.c.b16 %v382, %v378
        %v475 = vpack.c.b16 %v387, %v383
        %v476 = vpack.c.b16 %v388, %v384
        %v477 = vpack.c.b16 %v389, %v385
        %v478 = vpack.c.b16 %v390, %v386
        %v479 = vpack.c.b16 %v395, %v391
        %v480 = vpack.c.b16 %v396, %v392
        %v481 = vpack.c.b16 %v397, %v393
        %v482 = vpack.c.b16 %v398, %v394
        %v483 = vpack.c.b16 %v403, %v399
        %v484 = vpack.c.b16 %v404, %v400
        %v485 = vpack.c.b16 %v405, %v401
        %v486 = vpack.c.b16 %v406, %v402
        %v487 = vpack.c.b16 %v411, %v407
        %v488 = vpack.c.b16 %v412, %v408
        %v489 = vpack.c.b16 %v413, %v409
        %v490 = vpack.c.b16 %v414, %v410
        %v491 = vpack.c.b16 %v419, %v415
        %v492 = vpack.c.b16 %v420, %v416
        %v493 = vpack.c.b16 %v421, %v417
        %v494 = vpack.c.b16 %v422, %v418
        %v495 = vpack.c.b16 %v427, %v423
        %v496 = vpack.c.b16 %v428, %v424
        %v497 = vpack.c.b16 %v429, %v425
        %v498 = vpack.c.b16 %v430, %v426
        %v499 = vpack.c.b16 %v435, %v431
        %v500 = vpack.c.b16 %v436, %v432
        %v501 = vpack.c.b16 %v437, %v433
        %v502 = vpack.c.b16 %v438, %v434
        %567 = vmatprep.subr.bf16.mxu0 %v468
        %568 = vmatpush1.bf16.msra.mxu0 %v467
        %569 = vmatprep.subr.bf16.mxu0 %v464
        %570 = vmatpush1.bf16.msra.mxu0 %v463
        %571 = vmatprep.subr.bf16.mxu0 %v460
        %572 = vmatpush1.bf16.msra.mxu0 %v459
        %573 = vmatprep.subr.bf16.mxu0 %v456
        %574 = vmatpush1.bf16.msra.mxu0 %v455
        %575 = vmatprep.subr.bf16.mxu0 %v452
        %576 = vmatpush1.bf16.msra.mxu0 %v451
        %577 = vmatprep.subr.bf16.mxu0 %v448
        %578 = vmatpush1.bf16.msra.mxu0 %v447
        %579 = vmatprep.subr.bf16.mxu0 %v444
        %580 = vmatpush1.bf16.msra.mxu0 %v443
        %581 = vmatprep.subr.bf16.mxu0 %v440
        %582 = vmatpush1.bf16.msra.mxu0 %v439
        %583 = vmatprep.subr.bf16.mxu0 %v500
        %584 = vmatpush2.bf16.msra.mxu0 %v499
        %585 = vmatprep.subr.bf16.mxu0 %v496
        %586 = vmatpush2.bf16.msra.mxu0 %v495
        %587 = vmatprep.subr.bf16.mxu0 %v492
        %588 = vmatpush2.bf16.msra.mxu0 %v491
        %589 = vmatprep.subr.bf16.mxu0 %v488
        %590 = vmatpush2.bf16.msra.mxu0 %v487
        %591 = vmatprep.subr.bf16.mxu0 %v484
        %592 = vmatpush2.bf16.msra.mxu0 %v483
        %593 = vmatprep.subr.bf16.mxu0 %v480
        %594 = vmatpush2.bf16.msra.mxu0 %v479
        %595 = vmatprep.subr.bf16.mxu0 %v476
        %596 = vmatpush2.bf16.msra.mxu0 %v475
        %597 = vmatprep.subr.bf16.mxu0 %v472
        %598 = vmatpush2.bf16.msra.mxu0 %v471
        %599 = vmatprep.mubr.bf16.mxu0 %v244
        %600 = vmatmul.mubr.bf16.gmra.mxu0 %v243
        %v601 = vpop.f32.mrf.mxu0
        %v602 = vadd.f32 0.0, %v601
        %v603 = vpop.f32.mrf.mxu0
        %v604 = vadd.f32 0.0, %v603
        %v605 = vpop.f32.mrf.mxu0
        %v606 = vpop.f32.mrf.mxu0
        %607 = vdwg.mxu0
        %608 = vmatprep.subr.bf16.mxu0 %v470
        %609 = vmatpush1.bf16.msra.mxu0 %v469
        %610 = vmatprep.subr.bf16.mxu0 %v466
        %611 = vmatpush1.bf16.msra.mxu0 %v465
        %612 = vmatprep.subr.bf16.mxu0 %v462
        %613 = vmatpush1.bf16.msra.mxu0 %v461
        %614 = vmatprep.subr.bf16.mxu0 %v458
        %615 = vmatpush1.bf16.msra.mxu0 %v457
        %616 = vmatprep.subr.bf16.mxu0 %v454
        %617 = vmatpush1.bf16.msra.mxu0 %v453
        %618 = vmatprep.subr.bf16.mxu0 %v450
        %619 = vmatpush1.bf16.msra.mxu0 %v449
        %620 = vmatprep.subr.bf16.mxu0 %v446
        %621 = vmatpush1.bf16.msra.mxu0 %v445
        %622 = vmatprep.subr.bf16.mxu0 %v442
        %623 = vmatpush1.bf16.msra.mxu0 %v441
        %624 = vmatprep.subr.bf16.mxu0 %v502
        %625 = vmatpush2.bf16.msra.mxu0 %v501
        %626 = vmatprep.subr.bf16.mxu0 %v498
        %627 = vmatpush2.bf16.msra.mxu0 %v497
        %628 = vmatprep.subr.bf16.mxu0 %v494
        %629 = vmatpush2.bf16.msra.mxu0 %v493
        %630 = vmatprep.subr.bf16.mxu0 %v490
        %631 = vmatpush2.bf16.msra.mxu0 %v489
        %632 = vmatprep.subr.bf16.mxu0 %v486
        %633 = vmatpush2.bf16.msra.mxu0 %v485
        %634 = vmatprep.subr.bf16.mxu0 %v482
        %635 = vmatpush2.bf16.msra.mxu0 %v481
        %636 = vmatprep.subr.bf16.mxu0 %v478
        %637 = vmatpush2.bf16.msra.mxu0 %v477
        %638 = vmatprep.subr.bf16.mxu0 %v474
        %639 = vmatpush2.bf16.msra.mxu0 %v473
        %640 = vmatprep.mubr.bf16.mxu0 %v244
        %641 = vmatmul.mubr.bf16.gmra.mxu0 %v243
        %v642 = vpop.f32.mrf.mxu0
        %v643 = vadd.f32 0.0, %v642
        %v644 = vpop.f32.mrf.mxu0
        %v645 = vadd.f32 0.0, %v644
        %v646 = vpop.f32.mrf.mxu0
        %v647 = vpop.f32.mrf.mxu0
        %648 = vdwg.mxu0
        %649 = vst [vmem:[%s174] sm:$0xff] %v602
        %650 = vst [vmem:[%s174 + $0x8] sm:$0xff] %v604
        %651 = vst [vmem:[%s174 + $0x10] sm:$0xff] %v643
        %652 = vst [vmem:[%s174 + $0x18] sm:$0xff] %v645
        %s653 = sand.u32 %s75, 1
        %s654 = scalar_lea.sflag [#allocation4], %s653
        %s655 = sand.u32 %s75, 1
        %s656 = smul.addr %s655, 32
        %s657 = scalar_lea.vmem [#allocation7], %s656
        // Predicated region
        $region37: #{tpu_custom_call.1} parent=27 // pred_check
          %p658 = pneg %p85
        $region38: #{tpu_custom_call.1} parent=27 // pred_check_branch
          %660 = sbr.rel (%p658) target = $region40
        $region39: #{tpu_custom_call.1} parent=27 // pred_region
          %s662 = ssub.s32 512, 512
          %663 = vsyncadd %s654, %s662
          %s664 = smul.addr %s20, 4
          %s665 = smul.addr %s664, 128
          %s666 = scalar_lea.hbm %s2, %s665
          %s668 = sshll.u32 %s657, 4
          %s669 = int_to_ptr.vmem [resolvable:$true] %s668
          %671 = dma.vmem_to_hbm [thread:$0]  %s669, 512, %s666, %s654
        $region40: #{tpu_custom_call.1} parent=27 // pred_fallthru
          _
      $region28: #{tpu_custom_call.1} parent=5 // pred_fallthru
        _
      %p672 = scmp.le.s32.totalorder 2, %s15
      // Predicated region
      $region41: #{tpu_custom_call.1} parent=5 // pred_check
        %p673 = pneg %p672
      $region42: #{tpu_custom_call.1} parent=5 // pred_check_branch
        %675 = sbr.rel (%p673) target = $region44
      $region43: #{tpu_custom_call.1} parent=5 // pred_region
        %s676 = ssub.s32 %s15, 2
        // Predicated region
        $region45: #{tpu_custom_call.1} parent=43 // pred_check
          %p677 = pneg %p91
        $region46: #{tpu_custom_call.1} parent=43 // pred_check_branch
          %679 = sbr.rel (%p677) target = $region48
        $region47: #{tpu_custom_call.1} parent=43 // pred_region
          %s680 = sand.u32 %s76, 1
          %s681 = scalar_lea.sflag [#allocation4], %s680
          %s682 = sand.u32 %s76, 1
          %s683 = smul.addr %s682, 32
          %s684 = scalar_lea.vmem [#allocation7], %s683
          %685 = dma.done %s681, 512
        $region48: #{tpu_custom_call.1} parent=43 // pred_fallthru
          _
      $region44: #{tpu_custom_call.1} parent=5 // pred_fallthru
        _
    $region6: #{tpu_custom_call.1} parent=1 // loop_footer
      %s19 = sadd.s32 1, %s15
    $region7: #{tpu_custom_call.1} parent=1 // loop_footer_branch
      %14 = sbr.rel target = $region3
    $region8: #{tpu_custom_call.1} parent=1 // loop_exit
      _
    %686 = vsyncpa [#allocation3], 1
    %s687 = scalar_lea.sflag [#allocation3], 1
    %688 = vsyncpa %s687, 1
    %689 = vsyncpa [#allocation6], 1
    %690 = vsyncpa [#allocation4], 1
    %s691 = scalar_lea.sflag [#allocation4], 1
    %692 = vsyncpa %s691, 1

</llo_original>
